<compile_context>
chip_gen: v7x
topology: tpu7x:2x2x1
jax: 0.10.0
libtpu: 0.0.40
codegen_flags: <defaults>
</compile_context>

<pallas_src>
import functools

import jax
import jax.numpy as jnp
from jax.experimental import pallas as pl
from jax.experimental.pallas import tpu as pltpu


def _mlp_kernel(n_layers, x_ref, *refs):
    """refs = (w1, b1, w2, b2, ..., wL, bL, out_ref).

    Transposed layout: activations are (features, batch-tile); batch maps to
    vreg lanes, so elementwise work is lane-dense and stores are unmasked.
    """
    out_ref = refs[-1]
    param_refs = refs[:-1]

    h = x_ref[...].astype(jnp.float32)                        # (d_in, tile_n)
    for li in range(n_layers):
        w = param_refs[2 * li][...].astype(jnp.float32)       # (d_out_l, d_in_l)
        b = param_refs[2 * li + 1][...].astype(jnp.float32)   # (d_out_l, 1)

        # MXU matmul for every layer (even K=2): MXU extended slot has slack,
        # the VPU is the binding slot.  Bias broadcasts across lanes (batch).
        h = jnp.dot(w, h, preferred_element_type=jnp.float32) + b

        if li < n_layers - 1:
            # SiLU = h * sigmoid(h).  exp and the approximate reciprocal run
            # on the EUP slot; only neg/add/mul (~3 ops/elem) hit the VALU.
            s = pl.reciprocal(1.0 + jnp.exp(-h), approx=True)
            h = h * s

    out_ref[...] = h.astype(out_ref.dtype)


def _num_tensorcores():
    """Best-effort TensorCores-per-chip (v7x has 2; v5e/v6e have 1)."""
    try:
        kind = jax.devices()[0].device_kind.lower()
    except Exception:
        return 1
    return 2 if "v7" in kind else 1


def _choose_tile_blocks(m_blocks, cap_blocks, num_cores):
    """Largest divisor of m_blocks (in 128-lane units) <= cap_blocks, subject
    (on multi-core parts) to >= 2 grid steps per core when possible."""
    cap = max(1, min(m_blocks, cap_blocks))

    def largest(min_steps):
        for d in range(cap, 0, -1):
            if m_blocks % d == 0 and m_blocks // d >= min_steps:
                return d
        return None

    if num_cores >= 2:
        # v7x: prefer >=2 steps per core (double-buffering on both cores),
        # else at least one step per core, else whatever fits.
        return largest(2 * num_cores) or largest(num_cores) or largest(1)
    # v5e/v6e: grid is a serial loop on one TC -> biggest tile, grid=(1,) ok.
    return largest(1)


def pinn_forward(x, params, *, tile_n=8192, x_is_transposed=False):
    """Run the PINN MLP forward pass.

    x:      (N, layers[0]) collocation points (x, t), or (layers[0], N) if
            x_is_transposed=True (preferred: avoids the wrapper transpose).
    params: list of (W, b) with W in PyTorch layout (out, in), b (out,).
    Returns (N, layers[-1]).
    """
    n_layers = len(params)
    if x_is_transposed:
        d_in, N = x.shape
        x_t = x
    else:
        N, d_in = x.shape
        x_t = x.T          # one-time layout plumbing (8*N*d_in bytes each way)
    d_out = params[-1][0].shape[0]

    # Lane-dense batch tiling: pad N up to a multiple of 128 if needed.
    n_pad = -(-N // 128) * 128
    if n_pad != N:
        x_t = jnp.pad(x_t, ((0, 0), (0, n_pad - N)))

    cap_blocks = max(1, tile_n // 128)
    tile_blocks = _choose_tile_blocks(n_pad // 128, cap_blocks, _num_tensorcores())
    tile = 128 * tile_blocks
    grid = (n_pad // tile,)

    flat_params = []
    param_specs = []
    for (w, b) in params:
        b2 = b.reshape(-1, 1)                    # (out, 1): broadcasts over lanes
        flat_params.append(w)
        flat_params.append(b2)
        # Grid-invariant blocks (constant index_map) -> DMA'd once per call.
        param_specs.append(pl.BlockSpec(w.shape, lambda i: (0, 0)))
        param_specs.append(pl.BlockSpec(b2.shape, lambda i: (0, 0)))
    # TODO(synk): minor win -- pack all params into one (8,128)-aligned blob
    # with a single constant-index BlockSpec to cut DMA-descriptor overhead.
    # (pipeline_mode=pl.Buffered(3) on the x spec only pays off for tiles
    # <=512 with >=3 grid steps; with the large default tiles depth-2 is fine.)

    in_specs = [pl.BlockSpec((d_in, tile), lambda i: (0, i))] + param_specs
    out_spec = pl.BlockSpec((d_out, tile), lambda i: (0, i))

    # Advisory cost hint for XLA scheduling around this small custom call.
    flops = 2 * n_pad * sum(int(w.shape[0]) * int(w.shape[1]) for (w, _) in params)
    hidden_units = sum(int(w.shape[0]) for (w, _) in params[:-1])
    param_bytes = sum(int(w.size) * w.dtype.itemsize + int(b.size) * b.dtype.itemsize
                      for (w, b) in params)
    cost = pl.CostEstimate(
        flops=flops,
        transcendentals=2 * n_pad * hidden_units,   # exp + approx recip per SiLU elem
        bytes_accessed=(n_pad * d_in * 4 + param_bytes + n_pad * d_out * 4),
    )

    kernel = functools.partial(_mlp_kernel, n_layers)

    out_t = pl.pallas_call(
        kernel,
        out_shape=jax.ShapeDtypeStruct((d_out, n_pad), x.dtype),
        grid_spec=pltpu.PrefetchScalarGridSpec(
            num_scalar_prefetch=0,
            grid=grid,
            in_specs=in_specs,
            out_specs=out_spec,
        ),
        compiler_params=pltpu.CompilerParams(
            dimension_semantics=("parallel",),
        ),
        cost_estimate=cost,
    )(x_t, *flat_params)

    out_t = out_t[:, :N]
    if d_out == 1:
        # (1, N) row-major == (N, 1) row-major: this reshape is free (no copy).
        return out_t.reshape(N, 1)
    return out_t.T


def init_pinn_params(layers, key):
    """Deterministic init mimicking torch.nn.Linear (uniform +-1/sqrt(fan_in)).

    Returns list of (W, b) with W in PyTorch layout (out, in), b shape (out,).
    """
    params = []
    for i in range(len(layers) - 1):
        fan_in, fan_out = layers[i], layers[i + 1]
        key, kw, kb = jax.random.split(key, 3)
        bound = 1.0 / jnp.sqrt(fan_in)
        w = jax.random.uniform(kw, (fan_out, fan_in), jnp.float32,
                               minval=-bound, maxval=bound)
        b = jax.random.uniform(kb, (fan_out,), jnp.float32,
                               minval=-bound, maxval=bound)
        params.append((w, b))
    return params


def pinn_reference(x, params):
    """Pure-JAX reference of the PyTorch forward (x @ W.T + b, SiLU between)."""
    h = x
    n = len(params)
    for li, (w, b) in enumerate(params):
        h = h @ w.T + b
        if li < n - 1:
            h = jax.nn.silu(h)
    return h


if __name__ == "__main__":
    # PINN for 1-D Camassa-Holm: input (x, t) -> output u.
    layers = [2, 32, 32, 1]
    key = jax.random.PRNGKey(0)
    key, kx = jax.random.split(key)

    N = 512                      # collocation points (small demo batch)
    x = jax.random.normal(kx, (N, layers[0]), jnp.float32)

    params = init_pinn_params(layers, key)

    fwd = jax.jit(functools.partial(pinn_forward, params=params))
    out = jax.block_until_ready(fwd(x))

    ref = pinn_reference(x, params)
    assert out.shape == (N, layers[-1])
    # approx=True reciprocal inside the in-kernel sigmoid => loosened check.
    assert jnp.allclose(out, ref, atol=5e-3, rtol=5e-3), "mismatch vs reference"

    print("KERNEL_OK")
</pallas_src>

<mosaic_0001>
module attributes {stable_mosaic.version = 11 : i64} {
  func.func @_mlp_kernel(%arg0: i32, %arg1: memref<2x512xf32, #tpu.memory_space<vmem>>, %arg2: memref<32x2xf32, #tpu.memory_space<vmem>>, %arg3: memref<32x1xf32, #tpu.memory_space<vmem>>, %arg4: memref<32x32xf32, #tpu.memory_space<vmem>>, %arg5: memref<32x1xf32, #tpu.memory_space<vmem>>, %arg6: memref<1x32xf32, #tpu.memory_space<vmem>>, %arg7: memref<1x1xf32, #tpu.memory_space<vmem>>, %arg8: memref<1x512xf32, #tpu.memory_space<vmem>>) attributes {dimension_semantics = [#tpu.dimension_semantics<parallel>], iteration_bounds = array<i64: 1>, scalar_prefetch = 0 : i64, scratch_operands = 0 : i64, tpu.core_type = #tpu.core_type<tc>, window_params = [{transform_indices = @transform_0, window_bounds = array<i64: 2, 512>}, {pipeline_mode = #tpu.pipeline_mode<synchronous>, transform_indices = @transform_1, window_bounds = array<i64: 32, 2>}, {pipeline_mode = #tpu.pipeline_mode<synchronous>, transform_indices = @transform_2, window_bounds = array<i64: 32, 1>}, {pipeline_mode = #tpu.pipeline_mode<synchronous>, transform_indices = @transform_3, window_bounds = array<i64: 32, 32>}, {pipeline_mode = #tpu.pipeline_mode<synchronous>, transform_indices = @transform_4, window_bounds = array<i64: 32, 1>}, {pipeline_mode = #tpu.pipeline_mode<synchronous>, transform_indices = @transform_5, window_bounds = array<i64: 1, 32>}, {pipeline_mode = #tpu.pipeline_mode<synchronous>, transform_indices = @transform_6, window_bounds = array<i64: 1, 1>}, {transform_indices = @transform_7, window_bounds = array<i64: 1, 512>}]} {
    %c0 = arith.constant 0 : index
    %c0_0 = arith.constant 0 : index
    %0 = vector.load %arg1[%c0, %c0_0] : memref<2x512xf32, #tpu.memory_space<vmem>>, vector<2x512xf32>
    %c0_1 = arith.constant 0 : index
    %c0_2 = arith.constant 0 : index
    %1 = vector.load %arg2[%c0_1, %c0_2] : memref<32x2xf32, #tpu.memory_space<vmem>>, vector<32x2xf32>
    %c0_3 = arith.constant 0 : index
    %c0_4 = arith.constant 0 : index
    %2 = vector.load %arg3[%c0_3, %c0_4] : memref<32x1xf32, #tpu.memory_space<vmem>>, vector<32x1xf32>
    %cst = arith.constant dense<0.000000e+00> : vector<32x512xf32>
    %3 = tpu.matmul %1, %0, %cst {dimension_numbers = #tpu.dot_dimension_numbers<[1], [0], [0], [1], [0, 0, 1, 1], [], []>} : vector<32x2xf32>, vector<2x512xf32>, vector<32x512xf32> -> vector<32x512xf32>
    %4 = vector.broadcast %2 : vector<32x1xf32> to vector<32x512xf32>
    %5 = arith.addf %3, %4 : vector<32x512xf32>
    %cst_5 = arith.constant 0.000000e+00 : f32
    %6 = vector.broadcast %cst_5 : f32 to vector<32x512xf32>
    %7 = arith.subf %6, %5 : vector<32x512xf32>
    %8 = math.exp %7 : vector<32x512xf32>
    %cst_6 = arith.constant 1.000000e+00 : f32
    %9 = vector.broadcast %cst_6 : f32 to vector<32x512xf32>
    %10 = arith.addf %9, %8 : vector<32x512xf32>
    %11 = tpu.reciprocal %10 {approx = true} : vector<32x512xf32> -> vector<32x512xf32>
    %12 = arith.mulf %5, %11 : vector<32x512xf32>
    %c0_7 = arith.constant 0 : index
    %c0_8 = arith.constant 0 : index
    %13 = vector.load %arg4[%c0_7, %c0_8] : memref<32x32xf32, #tpu.memory_space<vmem>>, vector<32x32xf32>
    %c0_9 = arith.constant 0 : index
    %c0_10 = arith.constant 0 : index
    %14 = vector.load %arg5[%c0_9, %c0_10] : memref<32x1xf32, #tpu.memory_space<vmem>>, vector<32x1xf32>
    %cst_11 = arith.constant dense<0.000000e+00> : vector<32x512xf32>
    %15 = tpu.matmul %13, %12, %cst_11 {dimension_numbers = #tpu.dot_dimension_numbers<[1], [0], [0], [1], [0, 0, 1, 1], [], []>} : vector<32x32xf32>, vector<32x512xf32>, vector<32x512xf32> -> vector<32x512xf32>
    %16 = vector.broadcast %14 : vector<32x1xf32> to vector<32x512xf32>
    %17 = arith.addf %15, %16 : vector<32x512xf32>
    %cst_12 = arith.constant 0.000000e+00 : f32
    %18 = vector.broadcast %cst_12 : f32 to vector<32x512xf32>
    %19 = arith.subf %18, %17 : vector<32x512xf32>
    %20 = math.exp %19 : vector<32x512xf32>
    %cst_13 = arith.constant 1.000000e+00 : f32
    %21 = vector.broadcast %cst_13 : f32 to vector<32x512xf32>
    %22 = arith.addf %21, %20 : vector<32x512xf32>
    %23 = tpu.reciprocal %22 {approx = true} : vector<32x512xf32> -> vector<32x512xf32>
    %24 = arith.mulf %17, %23 : vector<32x512xf32>
    %c0_14 = arith.constant 0 : index
    %c0_15 = arith.constant 0 : index
    %25 = vector.load %arg6[%c0_14, %c0_15] : memref<1x32xf32, #tpu.memory_space<vmem>>, vector<1x32xf32>
    %c0_16 = arith.constant 0 : index
    %c0_17 = arith.constant 0 : index
    %26 = vector.load %arg7[%c0_16, %c0_17] : memref<1x1xf32, #tpu.memory_space<vmem>>, vector<1x1xf32>
    %cst_18 = arith.constant dense<0.000000e+00> : vector<1x512xf32>
    %27 = tpu.matmul %25, %24, %cst_18 {dimension_numbers = #tpu.dot_dimension_numbers<[1], [0], [0], [1], [0, 0, 1, 1], [], []>} : vector<1x32xf32>, vector<32x512xf32>, vector<1x512xf32> -> vector<1x512xf32>
    %28 = vector.broadcast %26 : vector<1x1xf32> to vector<1x512xf32>
    %29 = arith.addf %27, %28 : vector<1x512xf32>
    %c0_19 = arith.constant 0 : index
    %c0_20 = arith.constant 0 : index
    %30 = vector.load %arg8[%c0_19, %c0_20] : memref<1x512xf32, #tpu.memory_space<vmem>>, vector<1x512xf32>
    tpu.vector_store %arg8[%c0_19, %c0_20], %29 {strides = array<i32>} : memref<1x512xf32, #tpu.memory_space<vmem>>, vector<1x512xf32>,
    return
  }
  func.func @transform_0(%arg0: i32) -> (i32, i32) {
    %c0_i32 = arith.constant 0 : i32
    %c0_i32_0 = arith.constant 0 : i32
    return %c0_i32, %arg0 : i32, i32
  }
  func.func @transform_1(%arg0: i32) -> (i32, i32) {
    %c0_i32 = arith.constant 0 : i32
    %c0_i32_0 = arith.constant 0 : i32
    %c0_i32_1 = arith.constant 0 : i32
    return %c0_i32, %c0_i32_0 : i32, i32
  }
  func.func @transform_2(%arg0: i32) -> (i32, i32) {
    %c0_i32 = arith.constant 0 : i32
    %c0_i32_0 = arith.constant 0 : i32
    %c0_i32_1 = arith.constant 0 : i32
    return %c0_i32, %c0_i32_0 : i32, i32
  }
  func.func @transform_3(%arg0: i32) -> (i32, i32) {
    %c0_i32 = arith.constant 0 : i32
    %c0_i32_0 = arith.constant 0 : i32
    %c0_i32_1 = arith.constant 0 : i32
    return %c0_i32, %c0_i32_0 : i32, i32
  }
  func.func @transform_4(%arg0: i32) -> (i32, i32) {
    %c0_i32 = arith.constant 0 : i32
    %c0_i32_0 = arith.constant 0 : i32
    %c0_i32_1 = arith.constant 0 : i32
    return %c0_i32, %c0_i32_0 : i32, i32
  }
  func.func @transform_5(%arg0: i32) -> (i32, i32) {
    %c0_i32 = arith.constant 0 : i32
    %c0_i32_0 = arith.constant 0 : i32
    %c0_i32_1 = arith.constant 0 : i32
    return %c0_i32, %c0_i32_0 : i32, i32
  }
  func.func @transform_6(%arg0: i32) -> (i32, i32) {
    %c0_i32 = arith.constant 0 : i32
    %c0_i32_0 = arith.constant 0 : i32
    %c0_i32_1 = arith.constant 0 : i32
    return %c0_i32, %c0_i32_0 : i32, i32
  }
  func.func @transform_7(%arg0: i32) -> (i32, i32) {
    %c0_i32 = arith.constant 0 : i32
    %c0_i32_0 = arith.constant 0 : i32
    return %c0_i32, %arg0 : i32, i32
  }
}

</mosaic_0001>

<llo_original>
// kernel: pinn_forward.1
$region0: #{pinn_forward.1}
  #allocation0 [shape = 'u32[]', space=smem, size = 0x4, offset = 0x4, fixed_abs, tag = 'smem constant byte address 0x4 - core index']
  #allocation1 [shape = 'u32[144,128]{1,0:T(1,128)}', space=vmem, size = 0x12000, scoped, tag = 'internal scratch']
  #allocation2 [shape = 'f32[1,1]{1,0:T(1,128)S(1)}', space=vmem, size = 0x200, scoped, tag = 'scoped memory for pinn_forward.1']
  %s0 = inlined_call_operand.hbm [shape: f32[2,512], index: 0, kind: input, shape index: {}]
  %s1 = inlined_call_operand.hbm [shape: f32[32,2], index: 1, kind: input, shape index: {}]
  %s2 = inlined_call_operand.hbm [shape: f32[32,1], index: 2, kind: input, shape index: {}]
  %s3 = inlined_call_operand.hbm [shape: f32[32,32], index: 3, kind: input, shape index: {}]
  %s4 = inlined_call_operand.hbm [shape: f32[32,1], index: 4, kind: input, shape index: {}]
  %s5 = inlined_call_operand.vmem [shape: f32[1,32], index: 5, kind: input, shape index: {}]
  %s6 = inlined_call_operand.<no memory space> [shape: f32[1,1], index: 6, kind: input, shape index: {}]
  %s7 = inlined_call_operand.hbm [shape: f32[1,512], index: 7, kind: output, shape index: {}]
  %s8 = sld [smem:[#allocation0]]
  $region58: #{pinn_forward.1} parent=0
    _
  %s10 = ssub.s32 1, %s8
  %s11 = scalar_select 0, %s10, %s8
  %v12 = vstv %s6
  %13 = vst [vmem:[#allocation2] sm:$0x1] %v12
  $region1: #{pinn_forward.1} parent=0
    #allocation3 [shape = 'u8[4096]{0}', space=vmem, size = 0x1000, scoped, tag = 'input window, operand 0, single buffered']
    #allocation4 [shape = 's32[1]{0}', space=sflag, size = 0x4, scoped, tag = 'scoped memory for pinn_forward.1']
    #allocation5 [shape = 's32[1]{0}', space=sflag, size = 0x4, scoped, tag = 'scoped memory for pinn_forward.1']
    #allocation6 [shape = 'u8[16384]{0}', space=vmem, size = 0x4000, scoped, tag = 'input window, operand 1, single buffered']
    #allocation7 [shape = 's32[1]{0}', space=sflag, size = 0x4, scoped, tag = 'scoped memory for pinn_forward.1']
    #allocation8 [shape = 'u8[16384]{0}', space=vmem, size = 0x4000, scoped, tag = 'input window, operand 2, single buffered']
    #allocation9 [shape = 'u8[16384]{0}', space=vmem, size = 0x4000, scoped, tag = 'input window, operand 3, single buffered']
    #allocation10 [shape = 's32[1]{0}', space=sflag, size = 0x4, scoped, tag = 'scoped memory for pinn_forward.1']
    #allocation11 [shape = 'u8[16384]{0}', space=vmem, size = 0x4000, scoped, tag = 'input window, operand 4, single buffered']
    #allocation12 [shape = 'u8[2048]{0}', space=vmem, size = 0x800, scoped, tag = 'output window, operand 0, single buffered']
    %14 = vsyncpa [#allocation4], 0
    %15 = vsyncpa [#allocation7], 0
    %16 = vsyncpa [#allocation10], 0
    %17 = vsyncpa [#allocation5], 0
    // Predicated region
    $region2: #{pinn_forward.1} parent=1 // pred_check
      _
    $region3: #{pinn_forward.1} parent=1 // pred_check_branch
      %19 = sbr.rel (0) target = $region5
    $region4: #{pinn_forward.1} parent=1 // pred_region
      %s21 = ssub.s32 128, 128
      %22 = vsyncadd [#allocation4], %s21
      %s24 = sshll.u32 [#allocation3], 4
      %s25 = int_to_ptr.vmem [resolvable:$true] %s24
      %27 = dma.hbm_to_vmem [thread:$0]  %s0, 128, %s25, [#allocation4]
    $region5: #{pinn_forward.1} parent=1 // pred_fallthru
      _
    // Predicated region
    $region6: #{pinn_forward.1} parent=1 // pred_check
      _
    $region7: #{pinn_forward.1} parent=1 // pred_check_branch
      %29 = sbr.rel (0) target = $region9
    $region8: #{pinn_forward.1} parent=1 // pred_region
      %s31 = ssub.s32 512, 512
      %32 = vsyncadd [#allocation7], %s31
      %s33 = sshll.u32 [#allocation6], 4
      %s34 = int_to_ptr.vmem [resolvable:$true] %s33
      %39 = dma.hbm_to_vmem [thread:$0]  %s1, 512, %s34, [#allocation7], 128, 128, 8
    $region9: #{pinn_forward.1} parent=1 // pred_fallthru
      _
    // Predicated region
    $region10: #{pinn_forward.1} parent=1 // pred_check
      _
    $region11: #{pinn_forward.1} parent=1 // pred_check_branch
      %41 = sbr.rel (0) target = $region13
    $region12: #{pinn_forward.1} parent=1 // pred_region
      %s43 = ssub.s32 512, 512
      %44 = vsyncadd [#allocation7], %s43
      %s45 = sshll.u32 [#allocation8], 4
      %s46 = int_to_ptr.vmem [resolvable:$true] %s45
      %51 = dma.hbm_to_vmem [thread:$0]  %s2, 512, %s46, [#allocation7], 128, 128, 8
    $region13: #{pinn_forward.1} parent=1 // pred_fallthru
      _
    // Predicated region
    $region14: #{pinn_forward.1} parent=1 // pred_check
      _
    $region15: #{pinn_forward.1} parent=1 // pred_check_branch
      %53 = sbr.rel (0) target = $region17
    $region16: #{pinn_forward.1} parent=1 // pred_region
      %s55 = ssub.s32 512, 512
      %56 = vsyncadd [#allocation10], %s55
      %s57 = sshll.u32 [#allocation9], 4
      %s58 = int_to_ptr.vmem [resolvable:$true] %s57
      %63 = dma.hbm_to_vmem [thread:$0]  %s3, 512, %s58, [#allocation10], 128, 128, 8
    $region17: #{pinn_forward.1} parent=1 // pred_fallthru
      _
    // Predicated region
    $region18: #{pinn_forward.1} parent=1 // pred_check
      _
    $region19: #{pinn_forward.1} parent=1 // pred_check_branch
      %65 = sbr.rel (0) target = $region21
    $region20: #{pinn_forward.1} parent=1 // pred_region
      %s67 = ssub.s32 512, 512
      %68 = vsyncadd [#allocation10], %s67
      %s69 = sshll.u32 [#allocation11], 4
      %s70 = int_to_ptr.vmem [resolvable:$true] %s69
      %75 = dma.hbm_to_vmem [thread:$0]  %s4, 512, %s70, [#allocation10], 128, 128, 8
    $region21: #{pinn_forward.1} parent=1 // pred_fallthru
      _
    // Predicated region
    $region22: #{pinn_forward.1} parent=1 // pred_check
      _
    $region23: #{pinn_forward.1} parent=1 // pred_check_branch
      %77 = sbr.rel (0) target = $region25
    $region24: #{pinn_forward.1} parent=1 // pred_region
      _
    $region25: #{pinn_forward.1} parent=1 // pred_fallthru
      _
    // Predicated region
    $region26: #{pinn_forward.1} parent=1 // pred_check
      _
    $region27: #{pinn_forward.1} parent=1 // pred_check_branch
      %79 = sbr.rel (0) target = $region29
    $region28: #{pinn_forward.1} parent=1 // pred_region
      _
    $region29: #{pinn_forward.1} parent=1 // pred_fallthru
      _
    // Predicated region
    $region30: #{pinn_forward.1} parent=1 // pred_check
      _
    $region31: #{pinn_forward.1} parent=1 // pred_check_branch
      %81 = sbr.rel (0) target = $region33
    $region32: #{pinn_forward.1} parent=1 // pred_region
      %82 = dma.done [#allocation4], 128
    $region33: #{pinn_forward.1} parent=1 // pred_fallthru
      _
    // Predicated region
    $region34: #{pinn_forward.1} parent=1 // pred_check
      _
    $region35: #{pinn_forward.1} parent=1 // pred_check_branch
      %84 = sbr.rel (0) target = $region37
    $region36: #{pinn_forward.1} parent=1 // pred_region
      %85 = dma.done [#allocation7], 512
    $region37: #{pinn_forward.1} parent=1 // pred_fallthru
      _
    // Predicated region
    $region38: #{pinn_forward.1} parent=1 // pred_check
      _
    $region39: #{pinn_forward.1} parent=1 // pred_check_branch
      %87 = sbr.rel (0) target = $region41
    $region40: #{pinn_forward.1} parent=1 // pred_region
      %88 = dma.done [#allocation7], 512
    $region41: #{pinn_forward.1} parent=1 // pred_fallthru
      _
    // Predicated region
    $region42: #{pinn_forward.1} parent=1 // pred_check
      _
    $region43: #{pinn_forward.1} parent=1 // pred_check_branch
      %90 = sbr.rel (0) target = $region45
    $region44: #{pinn_forward.1} parent=1 // pred_region
      %91 = dma.done [#allocation10], 512
    $region45: #{pinn_forward.1} parent=1 // pred_fallthru
      _
    // Predicated region
    $region46: #{pinn_forward.1} parent=1 // pred_check
      _
    $region47: #{pinn_forward.1} parent=1 // pred_check_branch
      %93 = sbr.rel (0) target = $region49
    $region48: #{pinn_forward.1} parent=1 // pred_region
      %94 = dma.done [#allocation10], 512
    $region49: #{pinn_forward.1} parent=1 // pred_fallthru
      _
    %v95 = vld [vmem:[#allocation3] sm:$0xff]
    %v96 = vld [vmem:[#allocation6] sm:$0xff]
    %v97 = vld [vmem:[#allocation6 + $0x8] sm:$0xff]
    %v98 = vld [vmem:[#allocation6 + $0x10] sm:$0xff]
    %v99 = vld [vmem:[#allocation6 + $0x18] sm:$0xff]
    %v100 = vld [vmem:[#allocation8] sm:$0xff]
    %v101 = vld [vmem:[#allocation8 + $0x8] sm:$0xff]
    %v102 = vld [vmem:[#allocation8 + $0x10] sm:$0xff]
    %v103 = vld [vmem:[#allocation8 + $0x18] sm:$0xff]
    %105 = vset.pattern.permute.xlu0 0
    %106 = vperm.xlu0 %105, %v100
    %v107 = vpop.permute.xlu0 %106
    %110 = vset.pattern.permute.xlu0 0
    %111 = vperm.xlu0 %110, %v101
    %v112 = vpop.permute.xlu0 %111
    %115 = vset.pattern.permute.xlu0 0
    %116 = vperm.xlu0 %115, %v102
    %v117 = vpop.permute.xlu0 %116
    %120 = vset.pattern.permute.xlu0 0
    %121 = vperm.xlu0 %120, %v103
    %v122 = vpop.permute.xlu0 %121
    %v125 = vcombine.high %v95, %v95
    %v127 = vunpack.c.l.s4 1983009808
    %v128 = vunpack.c.0.s8 %v127
    %v129 = vlaneseq
    %v130 = vshrl.u32 %v129, 7
    %v131 = vsub.s32 %v128, %v130
    %v132 = vrot.slane %v95, %v131
    %v134 = vunpack.c.l.s4 1983009808
    %v135 = vunpack.c.0.s8 %v134
    %v136 = vlaneseq
    %v137 = vshrl.u32 %v136, 7
    %v138 = vsub.s32 %v135, %v137
    %v139 = vrot.slane %v125, %v138
    %v140 = vcombine.high %v132, %v132
    %v141 = vcombine.high %v139, %v139
    %vm142 = vcmask 15360
    %v144 = vsel %vm142, %v96, 0
    %v147 = vsel %vm142, %v97, 0
    %v150 = vsel %vm142, %v98, 0
    %v153 = vsel %vm142, %v99, 0
    %vm155 = vcmask 1041408
    %v156 = vsel %vm155, %v132, 0
    %v158 = vsel %vm155, %v140, 0
    %v160 = vsel %vm155, %v139, 0
    %v162 = vsel %vm155, %v141, 0
    %164 = vmatprep.subr.mxu0 %v158
    %165 = vmatpush1.msra.mxu0 %v156
    %166 = vmatprep.subr.mxu0 0.0
    %167 = vmatpush1.msra.mxu0 0.0
    %168 = vmatprep.subr.mxu0 0.0
    %169 = vmatpush1.msra.mxu0 0.0
    %170 = vmatprep.subr.mxu0 0.0
    %171 = vmatpush1.msra.mxu0 0.0
    %172 = vmatprep.subr.mxu0 0.0
    %173 = vmatpush1.msra.mxu0 0.0
    %174 = vmatprep.subr.mxu0 0.0
    %175 = vmatpush1.msra.mxu0 0.0
    %176 = vmatprep.subr.mxu0 0.0
    %177 = vmatpush1.msra.mxu0 0.0
    %178 = vmatprep.subr.mxu0 0.0
    %179 = vmatpush1.msra.mxu0 0.0
    %180 = vmatprep.subr.mxu0 0.0
    %181 = vmatpush1.msra.mxu0 0.0
    %182 = vmatprep.subr.mxu0 0.0
    %183 = vmatpush1.msra.mxu0 0.0
    %184 = vmatprep.subr.mxu0 0.0
    %185 = vmatpush1.msra.mxu0 0.0
    %186 = vmatprep.subr.mxu0 0.0
    %187 = vmatpush1.msra.mxu0 0.0
    %188 = vmatprep.subr.mxu0 0.0
    %189 = vmatpush1.msra.mxu0 0.0
    %190 = vmatprep.subr.mxu0 0.0
    %191 = vmatpush1.msra.mxu0 0.0
    %192 = vmatprep.subr.mxu0 0.0
    %193 = vmatpush1.msra.mxu0 0.0
    %194 = vmatprep.subr.mxu0 0.0
    %195 = vmatpush1.msra.mxu0 0.0
    %196 = vmatprep.subr.mxu0 0.0
    %197 = vmatpush1.msra.mxu0 0.0
    %198 = vmatprep.subr.mxu0 0.0
    %199 = vmatpush1.msra.mxu0 0.0
    %200 = vmatprep.subr.mxu0 0.0
    %201 = vmatpush1.msra.mxu0 0.0
    %202 = vmatprep.subr.mxu0 0.0
    %203 = vmatpush1.msra.mxu0 0.0
    %204 = vmatprep.subr.mxu0 0.0
    %205 = vmatpush1.msra.mxu0 0.0
    %206 = vmatprep.subr.mxu0 0.0
    %207 = vmatpush1.msra.mxu0 0.0
    %208 = vmatprep.subr.mxu0 0.0
    %209 = vmatpush1.msra.mxu0 0.0
    %210 = vmatprep.subr.mxu0 0.0
    %211 = vmatpush1.msra.mxu0 0.0
    %212 = vmatprep.subr.mxu0 0.0
    %213 = vmatpush1.msra.mxu0 0.0
    %214 = vmatprep.subr.mxu0 0.0
    %215 = vmatpush1.msra.mxu0 0.0
    %216 = vmatprep.subr.mxu0 0.0
    %217 = vmatpush1.msra.mxu0 0.0
    %218 = vmatprep.subr.mxu0 0.0
    %219 = vmatpush1.msra.mxu0 0.0
    %220 = vmatprep.subr.mxu0 0.0
    %221 = vmatpush1.msra.mxu0 0.0
    %222 = vmatprep.subr.mxu0 0.0
    %223 = vmatpush1.msra.mxu0 0.0
    %224 = vmatprep.subr.mxu0 0.0
    %225 = vmatpush1.msra.mxu0 0.0
    %226 = vmatprep.subr.mxu0 0.0
    %227 = vmatpush1.msra.mxu0 0.0
    %228 = vmatprep.mubr.f32.mxu0 0.0
    %229 = vmatmul.mubr.f32.gmra.mrb[0].mxu0 %v144
    %v230 = vpop.f32.mrb[0].mxu0
    %v231 = vadd.f32 %v107, %v230
    %v232 = vpop.f32.mrb[0].mxu0
    %v233 = vadd.f32 %v107, %v232
    %234 = vmatprep.mubr.f32.mxu0 0.0
    %235 = vmatmul.mubr.f32.gmra.mrb[0].mxu0 %v147
    %v236 = vpop.f32.mrb[0].mxu0
    %v237 = vadd.f32 %v112, %v236
    %v238 = vpop.f32.mrb[0].mxu0
    %v239 = vadd.f32 %v112, %v238
    %240 = vmatprep.mubr.f32.mxu0 0.0
    %241 = vmatmul.mubr.f32.gmra.mrb[0].mxu0 %v150
    %v242 = vpop.f32.mrb[0].mxu0
    %v243 = vadd.f32 %v117, %v242
    %v244 = vpop.f32.mrb[0].mxu0
    %v245 = vadd.f32 %v117, %v244
    %246 = vmatprep.mubr.f32.mxu0 0.0
    %247 = vmatmul.mubr.f32.gmra.mrb[0].mxu0 %v153
    %v248 = vpop.f32.mrb[0].mxu0
    %v249 = vadd.f32 %v122, %v248
    %v250 = vpop.f32.mrb[0].mxu0
    %v251 = vadd.f32 %v122, %v250
    %252 = vdwg.mxu0
    %253 = vmatprep.subr.mxu0 %v162
    %254 = vmatpush1.msra.mxu0 %v160
    %255 = vmatprep.subr.mxu0 0.0
    %256 = vmatpush1.msra.mxu0 0.0
    %257 = vmatprep.subr.mxu0 0.0
    %258 = vmatpush1.msra.mxu0 0.0
    %259 = vmatprep.subr.mxu0 0.0
    %260 = vmatpush1.msra.mxu0 0.0
    %261 = vmatprep.subr.mxu0 0.0
    %262 = vmatpush1.msra.mxu0 0.0
    %263 = vmatprep.subr.mxu0 0.0
    %264 = vmatpush1.msra.mxu0 0.0
    %265 = vmatprep.subr.mxu0 0.0
    %266 = vmatpush1.msra.mxu0 0.0
    %267 = vmatprep.subr.mxu0 0.0
    %268 = vmatpush1.msra.mxu0 0.0
    %269 = vmatprep.subr.mxu0 0.0
    %270 = vmatpush1.msra.mxu0 0.0
    %271 = vmatprep.subr.mxu0 0.0
    %272 = vmatpush1.msra.mxu0 0.0
    %273 = vmatprep.subr.mxu0 0.0
    %274 = vmatpush1.msra.mxu0 0.0
    %275 = vmatprep.subr.mxu0 0.0
    %276 = vmatpush1.msra.mxu0 0.0
    %277 = vmatprep.subr.mxu0 0.0
    %278 = vmatpush1.msra.mxu0 0.0
    %279 = vmatprep.subr.mxu0 0.0
    %280 = vmatpush1.msra.mxu0 0.0
    %281 = vmatprep.subr.mxu0 0.0
    %282 = vmatpush1.msra.mxu0 0.0
    %283 = vmatprep.subr.mxu0 0.0
    %284 = vmatpush1.msra.mxu0 0.0
    %285 = vmatprep.subr.mxu0 0.0
    %286 = vmatpush1.msra.mxu0 0.0
    %287 = vmatprep.subr.mxu0 0.0
    %288 = vmatpush1.msra.mxu0 0.0
    %289 = vmatprep.subr.mxu0 0.0
    %290 = vmatpush1.msra.mxu0 0.0
    %291 = vmatprep.subr.mxu0 0.0
    %292 = vmatpush1.msra.mxu0 0.0
    %293 = vmatprep.subr.mxu0 0.0
    %294 = vmatpush1.msra.mxu0 0.0
    %295 = vmatprep.subr.mxu0 0.0
    %296 = vmatpush1.msra.mxu0 0.0
    %297 = vmatprep.subr.mxu0 0.0
    %298 = vmatpush1.msra.mxu0 0.0
    %299 = vmatprep.subr.mxu0 0.0
    %300 = vmatpush1.msra.mxu0 0.0
    %301 = vmatprep.subr.mxu0 0.0
    %302 = vmatpush1.msra.mxu0 0.0
    %303 = vmatprep.subr.mxu0 0.0
    %304 = vmatpush1.msra.mxu0 0.0
    %305 = vmatprep.subr.mxu0 0.0
    %306 = vmatpush1.msra.mxu0 0.0
    %307 = vmatprep.subr.mxu0 0.0
    %308 = vmatpush1.msra.mxu0 0.0
    %309 = vmatprep.subr.mxu0 0.0
    %310 = vmatpush1.msra.mxu0 0.0
    %311 = vmatprep.subr.mxu0 0.0
    %312 = vmatpush1.msra.mxu0 0.0
    %313 = vmatprep.subr.mxu0 0.0
    %314 = vmatpush1.msra.mxu0 0.0
    %315 = vmatprep.subr.mxu0 0.0
    %316 = vmatpush1.msra.mxu0 0.0
    %317 = vmatprep.mubr.f32.mxu0 0.0
    %318 = vmatmul.mubr.f32.gmra.mrb[0].mxu0 %v144
    %v319 = vpop.f32.mrb[0].mxu0
    %v320 = vadd.f32 %v107, %v319
    %v321 = vpop.f32.mrb[0].mxu0
    %v322 = vadd.f32 %v107, %v321
    %323 = vmatprep.mubr.f32.mxu0 0.0
    %324 = vmatmul.mubr.f32.gmra.mrb[0].mxu0 %v147
    %v325 = vpop.f32.mrb[0].mxu0
    %v326 = vadd.f32 %v112, %v325
    %v327 = vpop.f32.mrb[0].mxu0
    %v328 = vadd.f32 %v112, %v327
    %329 = vmatprep.mubr.f32.mxu0 0.0
    %330 = vmatmul.mubr.f32.gmra.mrb[0].mxu0 %v150
    %v331 = vpop.f32.mrb[0].mxu0
    %v332 = vadd.f32 %v117, %v331
    %v333 = vpop.f32.mrb[0].mxu0
    %v334 = vadd.f32 %v117, %v333
    %335 = vmatprep.mubr.f32.mxu0 0.0
    %336 = vmatmul.mubr.f32.gmra.mrb[0].mxu0 %v153
    %v337 = vpop.f32.mrb[0].mxu0
    %v338 = vadd.f32 %v122, %v337
    %v339 = vpop.f32.mrb[0].mxu0
    %v340 = vadd.f32 %v122, %v339
    %341 = vdwg.mxu0
    %v342 = vsub.f32 0.0, %v231
    %v343 = vsub.f32 0.0, %v233
    %v344 = vsub.f32 0.0, %v320
    %v345 = vsub.f32 0.0, %v322
    %v346 = vsub.f32 0.0, %v237
    %v347 = vsub.f32 0.0, %v239
    %v348 = vsub.f32 0.0, %v326
    %v349 = vsub.f32 0.0, %v328
    %v350 = vsub.f32 0.0, %v243
    %v351 = vsub.f32 0.0, %v245
    %v352 = vsub.f32 0.0, %v332
    %v353 = vsub.f32 0.0, %v334
    %v354 = vsub.f32 0.0, %v249
    %v355 = vsub.f32 0.0, %v251
    %v356 = vsub.f32 0.0, %v338
    %v357 = vsub.f32 0.0, %v340
    %v358 = vmul.f32 %v342, 1.442695
    %v359 = vpow.pop %v358
    %v360 = vmul.f32 %v343, 1.442695
    %v361 = vpow.pop %v360
    %v362 = vmul.f32 %v344, 1.442695
    %v363 = vpow.pop %v362
    %v364 = vmul.f32 %v345, 1.442695
    %v365 = vpow.pop %v364
    %v366 = vmul.f32 %v346, 1.442695
    %v367 = vpow.pop %v366
    %v368 = vmul.f32 %v347, 1.442695
    %v369 = vpow.pop %v368
    %v370 = vmul.f32 %v348, 1.442695
    %v371 = vpow.pop %v370
    %v372 = vmul.f32 %v349, 1.442695
    %v373 = vpow.pop %v372
    %v374 = vmul.f32 %v350, 1.442695
    %v375 = vpow.pop %v374
    %v376 = vmul.f32 %v351, 1.442695
    %v377 = vpow.pop %v376
    %v378 = vmul.f32 %v352, 1.442695
    %v379 = vpow.pop %v378
    %v380 = vmul.f32 %v353, 1.442695
    %v381 = vpow.pop %v380
    %v382 = vmul.f32 %v354, 1.442695
    %v383 = vpow.pop %v382
    %v384 = vmul.f32 %v355, 1.442695
    %v385 = vpow.pop %v384
    %v386 = vmul.f32 %v356, 1.442695
    %v387 = vpow.pop %v386
    %v388 = vmul.f32 %v357, 1.442695
    %v389 = vpow.pop %v388
    %v390 = vadd.f32 %v359, 1.0
    %v391 = vadd.f32 %v361, 1.0
    %v392 = vadd.f32 %v363, 1.0
    %v393 = vadd.f32 %v365, 1.0
    %v394 = vadd.f32 %v367, 1.0
    %v395 = vadd.f32 %v369, 1.0
    %v396 = vadd.f32 %v371, 1.0
    %v397 = vadd.f32 %v373, 1.0
    %v398 = vadd.f32 %v375, 1.0
    %v399 = vadd.f32 %v377, 1.0
    %v400 = vadd.f32 %v379, 1.0
    %v401 = vadd.f32 %v381, 1.0
    %v402 = vadd.f32 %v383, 1.0
    %v403 = vadd.f32 %v385, 1.0
    %v404 = vadd.f32 %v387, 1.0
    %v405 = vadd.f32 %v389, 1.0
    %v406 = vrcp.pop %v390
    %v407 = vrcp.pop %v391
    %v408 = vrcp.pop %v392
    %v409 = vrcp.pop %v393
    %v410 = vrcp.pop %v394
    %v411 = vrcp.pop %v395
    %v412 = vrcp.pop %v396
    %v413 = vrcp.pop %v397
    %v414 = vrcp.pop %v398
    %v415 = vrcp.pop %v399
    %v416 = vrcp.pop %v400
    %v417 = vrcp.pop %v401
    %v418 = vrcp.pop %v402
    %v419 = vrcp.pop %v403
    %v420 = vrcp.pop %v404
    %v421 = vrcp.pop %v405
    %v422 = vmul.f32 %v231, %v406
    %v423 = vmul.f32 %v233, %v407
    %v424 = vmul.f32 %v320, %v408
    %v425 = vmul.f32 %v322, %v409
    %v426 = vmul.f32 %v237, %v410
    %v427 = vmul.f32 %v239, %v411
    %v428 = vmul.f32 %v326, %v412
    %v429 = vmul.f32 %v328, %v413
    %v430 = vmul.f32 %v243, %v414
    %v431 = vmul.f32 %v245, %v415
    %v432 = vmul.f32 %v332, %v416
    %v433 = vmul.f32 %v334, %v417
    %v434 = vmul.f32 %v249, %v418
    %v435 = vmul.f32 %v251, %v419
    %v436 = vmul.f32 %v338, %v420
    %v437 = vmul.f32 %v340, %v421
    %v438 = vld [vmem:[#allocation9] sm:$0xff]
    %v439 = vld [vmem:[#allocation9 + $0x8] sm:$0xff]
    %v440 = vld [vmem:[#allocation9 + $0x10] sm:$0xff]
    %v441 = vld [vmem:[#allocation9 + $0x18] sm:$0xff]
    %v442 = vld [vmem:[#allocation11] sm:$0xff]
    %v443 = vld [vmem:[#allocation11 + $0x8] sm:$0xff]
    %v444 = vld [vmem:[#allocation11 + $0x10] sm:$0xff]
    %v445 = vld [vmem:[#allocation11 + $0x18] sm:$0xff]
    %447 = vset.pattern.permute.xlu0 0
    %448 = vperm.xlu0 %447, %v442
    %v449 = vpop.permute.xlu0 %448
    %452 = vset.pattern.permute.xlu0 0
    %453 = vperm.xlu0 %452, %v443
    %v454 = vpop.permute.xlu0 %453
    %457 = vset.pattern.permute.xlu0 0
    %458 = vperm.xlu0 %457, %v444
    %v459 = vpop.permute.xlu0 %458
    %462 = vset.pattern.permute.xlu0 0
    %463 = vperm.xlu0 %462, %v445
    %v464 = vpop.permute.xlu0 %463
    %vm466 = vcmask 261120
    %v468 = vsel %vm466, %v438, 0
    %v471 = vsel %vm466, %v439, 0
    %v474 = vsel %vm466, %v440, 0
    %v477 = vsel %vm466, %v441, 0
    %479 = vmatprep.subr.mxu0 %v423
    %480 = vmatpush1.msra.mxu0 %v422
    %481 = vmatprep.subr.mxu0 %v427
    %482 = vmatpush1.msra.mxu0 %v426
    %483 = vmatprep.subr.mxu0 %v431
    %484 = vmatpush1.msra.mxu0 %v430
    %485 = vmatprep.subr.mxu0 %v435
    %486 = vmatpush1.msra.mxu0 %v434
    %487 = vmatprep.subr.mxu0 0.0
    %488 = vmatpush1.msra.mxu0 0.0
    %489 = vmatprep.subr.mxu0 0.0
    %490 = vmatpush1.msra.mxu0 0.0
    %491 = vmatprep.subr.mxu0 0.0
    %492 = vmatpush1.msra.mxu0 0.0
    %493 = vmatprep.subr.mxu0 0.0
    %494 = vmatpush1.msra.mxu0 0.0
    %495 = vmatprep.subr.mxu0 0.0
    %496 = vmatpush1.msra.mxu0 0.0
    %497 = vmatprep.subr.mxu0 0.0
    %498 = vmatpush1.msra.mxu0 0.0
    %499 = vmatprep.subr.mxu0 0.0
    %500 = vmatpush1.msra.mxu0 0.0
    %501 = vmatprep.subr.mxu0 0.0
    %502 = vmatpush1.msra.mxu0 0.0
    %503 = vmatprep.subr.mxu0 0.0
    %504 = vmatpush1.msra.mxu0 0.0
    %505 = vmatprep.subr.mxu0 0.0
    %506 = vmatpush1.msra.mxu0 0.0
    %507 = vmatprep.subr.mxu0 0.0
    %508 = vmatpush1.msra.mxu0 0.0
    %509 = vmatprep.subr.mxu0 0.0
    %510 = vmatpush1.msra.mxu0 0.0
    %511 = vmatprep.subr.mxu0 0.0
    %512 = vmatpush1.msra.mxu0 0.0
    %513 = vmatprep.subr.mxu0 0.0
    %514 = vmatpush1.msra.mxu0 0.0
    %515 = vmatprep.subr.mxu0 0.0
    %516 = vmatpush1.msra.mxu0 0.0
    %517 = vmatprep.subr.mxu0 0.0
    %518 = vmatpush1.msra.mxu0 0.0
    %519 = vmatprep.subr.mxu0 0.0
    %520 = vmatpush1.msra.mxu0 0.0
    %521 = vmatprep.subr.mxu0 0.0
    %522 = vmatpush1.msra.mxu0 0.0
    %523 = vmatprep.subr.mxu0 0.0
    %524 = vmatpush1.msra.mxu0 0.0
    %525 = vmatprep.subr.mxu0 0.0
    %526 = vmatpush1.msra.mxu0 0.0
    %527 = vmatprep.subr.mxu0 0.0
    %528 = vmatpush1.msra.mxu0 0.0
    %529 = vmatprep.subr.mxu0 0.0
    %530 = vmatpush1.msra.mxu0 0.0
    %531 = vmatprep.subr.mxu0 0.0
    %532 = vmatpush1.msra.mxu0 0.0
    %533 = vmatprep.subr.mxu0 0.0
    %534 = vmatpush1.msra.mxu0 0.0
    %535 = vmatprep.subr.mxu0 0.0
    %536 = vmatpush1.msra.mxu0 0.0
    %537 = vmatprep.subr.mxu0 0.0
    %538 = vmatpush1.msra.mxu0 0.0
    %539 = vmatprep.subr.mxu0 0.0
    %540 = vmatpush1.msra.mxu0 0.0
    %541 = vmatprep.subr.mxu0 0.0
    %542 = vmatpush1.msra.mxu0 0.0
    %543 = vmatprep.mubr.f32.mxu0 0.0
    %544 = vmatmul.mubr.f32.gmra.mrb[0].mxu0 %v468
    %v545 = vpop.f32.mrb[0].mxu0
    %v546 = vadd.f32 %v449, %v545
    %v547 = vpop.f32.mrb[0].mxu0
    %v548 = vadd.f32 %v449, %v547
    %549 = vmatprep.mubr.f32.mxu0 0.0
    %550 = vmatmul.mubr.f32.gmra.mrb[0].mxu0 %v471
    %v551 = vpop.f32.mrb[0].mxu0
    %v552 = vadd.f32 %v454, %v551
    %v553 = vpop.f32.mrb[0].mxu0
    %v554 = vadd.f32 %v454, %v553
    %555 = vmatprep.mubr.f32.mxu0 0.0
    %556 = vmatmul.mubr.f32.gmra.mrb[0].mxu0 %v474
    %v557 = vpop.f32.mrb[0].mxu0
    %v558 = vadd.f32 %v459, %v557
    %v559 = vpop.f32.mrb[0].mxu0
    %v560 = vadd.f32 %v459, %v559
    %561 = vmatprep.mubr.f32.mxu0 0.0
    %562 = vmatmul.mubr.f32.gmra.mrb[0].mxu0 %v477
    %v563 = vpop.f32.mrb[0].mxu0
    %v564 = vadd.f32 %v464, %v563
    %v565 = vpop.f32.mrb[0].mxu0
    %v566 = vadd.f32 %v464, %v565
    %567 = vdwg.mxu0
    %568 = vmatprep.subr.mxu0 %v425
    %569 = vmatpush1.msra.mxu0 %v424
    %570 = vmatprep.subr.mxu0 %v429
    %571 = vmatpush1.msra.mxu0 %v428
    %572 = vmatprep.subr.mxu0 %v433
    %573 = vmatpush1.msra.mxu0 %v432
    %574 = vmatprep.subr.mxu0 %v437
    %575 = vmatpush1.msra.mxu0 %v436
    %576 = vmatprep.subr.mxu0 0.0
    %577 = vmatpush1.msra.mxu0 0.0
    %578 = vmatprep.subr.mxu0 0.0
    %579 = vmatpush1.msra.mxu0 0.0
    %580 = vmatprep.subr.mxu0 0.0
    %581 = vmatpush1.msra.mxu0 0.0
    %582 = vmatprep.subr.mxu0 0.0
    %583 = vmatpush1.msra.mxu0 0.0
    %584 = vmatprep.subr.mxu0 0.0
    %585 = vmatpush1.msra.mxu0 0.0
    %586 = vmatprep.subr.mxu0 0.0
    %587 = vmatpush1.msra.mxu0 0.0
    %588 = vmatprep.subr.mxu0 0.0
    %589 = vmatpush1.msra.mxu0 0.0
    %590 = vmatprep.subr.mxu0 0.0
    %591 = vmatpush1.msra.mxu0 0.0
    %592 = vmatprep.subr.mxu0 0.0
    %593 = vmatpush1.msra.mxu0 0.0
    %594 = vmatprep.subr.mxu0 0.0
    %595 = vmatpush1.msra.mxu0 0.0
    %596 = vmatprep.subr.mxu0 0.0
    %597 = vmatpush1.msra.mxu0 0.0
    %598 = vmatprep.subr.mxu0 0.0
    %599 = vmatpush1.msra.mxu0 0.0
    %600 = vmatprep.subr.mxu0 0.0
    %601 = vmatpush1.msra.mxu0 0.0
    %602 = vmatprep.subr.mxu0 0.0
    %603 = vmatpush1.msra.mxu0 0.0
    %604 = vmatprep.subr.mxu0 0.0
    %605 = vmatpush1.msra.mxu0 0.0
    %606 = vmatprep.subr.mxu0 0.0
    %607 = vmatpush1.msra.mxu0 0.0
    %608 = vmatprep.subr.mxu0 0.0
    %609 = vmatpush1.msra.mxu0 0.0
    %610 = vmatprep.subr.mxu0 0.0
    %611 = vmatpush1.msra.mxu0 0.0
    %612 = vmatprep.subr.mxu0 0.0
    %613 = vmatpush1.msra.mxu0 0.0
    %614 = vmatprep.subr.mxu0 0.0
    %615 = vmatpush1.msra.mxu0 0.0
    %616 = vmatprep.subr.mxu0 0.0
    %617 = vmatpush1.msra.mxu0 0.0
    %618 = vmatprep.subr.mxu0 0.0
    %619 = vmatpush1.msra.mxu0 0.0
    %620 = vmatprep.subr.mxu0 0.0
    %621 = vmatpush1.msra.mxu0 0.0
    %622 = vmatprep.subr.mxu0 0.0
    %623 = vmatpush1.msra.mxu0 0.0
    %624 = vmatprep.subr.mxu0 0.0
    %625 = vmatpush1.msra.mxu0 0.0
    %626 = vmatprep.subr.mxu0 0.0
    %627 = vmatpush1.msra.mxu0 0.0
    %628 = vmatprep.subr.mxu0 0.0
    %629 = vmatpush1.msra.mxu0 0.0
    %630 = vmatprep.subr.mxu0 0.0
    %631 = vmatpush1.msra.mxu0 0.0
    %632 = vmatprep.mubr.f32.mxu0 0.0
    %633 = vmatmul.mubr.f32.gmra.mrb[0].mxu0 %v468
    %v634 = vpop.f32.mrb[0].mxu0
    %v635 = vadd.f32 %v449, %v634
    %v636 = vpop.f32.mrb[0].mxu0
    %v637 = vadd.f32 %v449, %v636
    %638 = vmatprep.mubr.f32.mxu0 0.0
    %639 = vmatmul.mubr.f32.gmra.mrb[0].mxu0 %v471
    %v640 = vpop.f32.mrb[0].mxu0
    %v641 = vadd.f32 %v454, %v640
    %v642 = vpop.f32.mrb[0].mxu0
    %v643 = vadd.f32 %v454, %v642
    %644 = vmatprep.mubr.f32.mxu0 0.0
    %645 = vmatmul.mubr.f32.gmra.mrb[0].mxu0 %v474
    %v646 = vpop.f32.mrb[0].mxu0
    %v647 = vadd.f32 %v459, %v646
    %v648 = vpop.f32.mrb[0].mxu0
    %v649 = vadd.f32 %v459, %v648
    %650 = vmatprep.mubr.f32.mxu0 0.0
    %651 = vmatmul.mubr.f32.gmra.mrb[0].mxu0 %v477
    %v652 = vpop.f32.mrb[0].mxu0
    %v653 = vadd.f32 %v464, %v652
    %v654 = vpop.f32.mrb[0].mxu0
    %v655 = vadd.f32 %v464, %v654
    %656 = vdwg.mxu0
    %v657 = vsub.f32 0.0, %v546
    %v658 = vsub.f32 0.0, %v548
    %v659 = vsub.f32 0.0, %v635
    %v660 = vsub.f32 0.0, %v637
    %v661 = vsub.f32 0.0, %v552
    %v662 = vsub.f32 0.0, %v554
    %v663 = vsub.f32 0.0, %v641
    %v664 = vsub.f32 0.0, %v643
    %v665 = vsub.f32 0.0, %v558
    %v666 = vsub.f32 0.0, %v560
    %v667 = vsub.f32 0.0, %v647
    %v668 = vsub.f32 0.0, %v649
    %v669 = vsub.f32 0.0, %v564
    %v670 = vsub.f32 0.0, %v566
    %v671 = vsub.f32 0.0, %v653
    %v672 = vsub.f32 0.0, %v655
    %v673 = vmul.f32 %v657, 1.442695
    %v674 = vpow.pop %v673
    %v675 = vmul.f32 %v658, 1.442695
    %v676 = vpow.pop %v675
    %v677 = vmul.f32 %v659, 1.442695
    %v678 = vpow.pop %v677
    %v679 = vmul.f32 %v660, 1.442695
    %v680 = vpow.pop %v679
    %v681 = vmul.f32 %v661, 1.442695
    %v682 = vpow.pop %v681
    %v683 = vmul.f32 %v662, 1.442695
    %v684 = vpow.pop %v683
    %v685 = vmul.f32 %v663, 1.442695
    %v686 = vpow.pop %v685
    %v687 = vmul.f32 %v664, 1.442695
    %v688 = vpow.pop %v687
    %v689 = vmul.f32 %v665, 1.442695
    %v690 = vpow.pop %v689
    %v691 = vmul.f32 %v666, 1.442695
    %v692 = vpow.pop %v691
    %v693 = vmul.f32 %v667, 1.442695
    %v694 = vpow.pop %v693
    %v695 = vmul.f32 %v668, 1.442695
    %v696 = vpow.pop %v695
    %v697 = vmul.f32 %v669, 1.442695
    %v698 = vpow.pop %v697
    %v699 = vmul.f32 %v670, 1.442695
    %v700 = vpow.pop %v699
    %v701 = vmul.f32 %v671, 1.442695
    %v702 = vpow.pop %v701
    %v703 = vmul.f32 %v672, 1.442695
    %v704 = vpow.pop %v703
    %v705 = vadd.f32 %v674, 1.0
    %v706 = vadd.f32 %v676, 1.0
    %v707 = vadd.f32 %v678, 1.0
    %v708 = vadd.f32 %v680, 1.0
    %v709 = vadd.f32 %v682, 1.0
    %v710 = vadd.f32 %v684, 1.0
    %v711 = vadd.f32 %v686, 1.0
    %v712 = vadd.f32 %v688, 1.0
    %v713 = vadd.f32 %v690, 1.0
    %v714 = vadd.f32 %v692, 1.0
    %v715 = vadd.f32 %v694, 1.0
    %v716 = vadd.f32 %v696, 1.0
    %v717 = vadd.f32 %v698, 1.0
    %v718 = vadd.f32 %v700, 1.0
    %v719 = vadd.f32 %v702, 1.0
    %v720 = vadd.f32 %v704, 1.0
    %v721 = vrcp.pop %v705
    %v722 = vrcp.pop %v706
    %v723 = vrcp.pop %v707
    %v724 = vrcp.pop %v708
    %v725 = vrcp.pop %v709
    %v726 = vrcp.pop %v710
    %v727 = vrcp.pop %v711
    %v728 = vrcp.pop %v712
    %v729 = vrcp.pop %v713
    %v730 = vrcp.pop %v714
    %v731 = vrcp.pop %v715
    %v732 = vrcp.pop %v716
    %v733 = vrcp.pop %v717
    %v734 = vrcp.pop %v718
    %v735 = vrcp.pop %v719
    %v736 = vrcp.pop %v720
    %v737 = vmul.f32 %v546, %v721
    %v738 = vmul.f32 %v548, %v722
    %v739 = vmul.f32 %v635, %v723
    %v740 = vmul.f32 %v637, %v724
    %v741 = vmul.f32 %v552, %v725
    %v742 = vmul.f32 %v554, %v726
    %v743 = vmul.f32 %v641, %v727
    %v744 = vmul.f32 %v643, %v728
    %v745 = vmul.f32 %v558, %v729
    %v746 = vmul.f32 %v560, %v730
    %v747 = vmul.f32 %v647, %v731
    %v748 = vmul.f32 %v649, %v732
    %v749 = vmul.f32 %v564, %v733
    %v750 = vmul.f32 %v566, %v734
    %v751 = vmul.f32 %v653, %v735
    %v752 = vmul.f32 %v655, %v736
    %v753 = vld [vmem:[%s5] sm:$0x1]
    %v754 = vld [vmem:[#allocation2] sm:$0x1]
    %756 = vset.pattern.permute.xlu0 0
    %757 = vperm.xlu0 %756, %v754
    %v758 = vpop.permute.xlu0 %757
    %v760 = vlaneseq
    %v761 = vshrl.u32 %v760, 7
    %v762 = vsub.s32 0, %v761
    %v763 = vrot.slane %v758, %v762
    %v765 = vsel %vm466, %v753, 0
    %767 = vmatprep.subr.mxu0 %v738
    %768 = vmatpush1.msra.mxu0 %v737
    %769 = vmatprep.subr.mxu0 %v742
    %770 = vmatpush1.msra.mxu0 %v741
    %771 = vmatprep.subr.mxu0 %v746
    %772 = vmatpush1.msra.mxu0 %v745
    %773 = vmatprep.subr.mxu0 %v750
    %774 = vmatpush1.msra.mxu0 %v749
    %775 = vmatprep.subr.mxu0 0.0
    %776 = vmatpush1.msra.mxu0 0.0
    %777 = vmatprep.subr.mxu0 0.0
    %778 = vmatpush1.msra.mxu0 0.0
    %779 = vmatprep.subr.mxu0 0.0
    %780 = vmatpush1.msra.mxu0 0.0
    %781 = vmatprep.subr.mxu0 0.0
    %782 = vmatpush1.msra.mxu0 0.0
    %783 = vmatprep.subr.mxu0 0.0
    %784 = vmatpush1.msra.mxu0 0.0
    %785 = vmatprep.subr.mxu0 0.0
    %786 = vmatpush1.msra.mxu0 0.0
    %787 = vmatprep.subr.mxu0 0.0
    %788 = vmatpush1.msra.mxu0 0.0
    %789 = vmatprep.subr.mxu0 0.0
    %790 = vmatpush1.msra.mxu0 0.0
    %791 = vmatprep.subr.mxu0 0.0
    %792 = vmatpush1.msra.mxu0 0.0
    %793 = vmatprep.subr.mxu0 0.0
    %794 = vmatpush1.msra.mxu0 0.0
    %795 = vmatprep.subr.mxu0 0.0
    %796 = vmatpush1.msra.mxu0 0.0
    %797 = vmatprep.subr.mxu0 0.0
    %798 = vmatpush1.msra.mxu0 0.0
    %799 = vmatprep.subr.mxu0 0.0
    %800 = vmatpush1.msra.mxu0 0.0
    %801 = vmatprep.subr.mxu0 0.0
    %802 = vmatpush1.msra.mxu0 0.0
    %803 = vmatprep.subr.mxu0 0.0
    %804 = vmatpush1.msra.mxu0 0.0
    %805 = vmatprep.subr.mxu0 0.0
    %806 = vmatpush1.msra.mxu0 0.0
    %807 = vmatprep.subr.mxu0 0.0
    %808 = vmatpush1.msra.mxu0 0.0
    %809 = vmatprep.subr.mxu0 0.0
    %810 = vmatpush1.msra.mxu0 0.0
    %811 = vmatprep.subr.mxu0 0.0
    %812 = vmatpush1.msra.mxu0 0.0
    %813 = vmatprep.subr.mxu0 0.0
    %814 = vmatpush1.msra.mxu0 0.0
    %815 = vmatprep.subr.mxu0 0.0
    %816 = vmatpush1.msra.mxu0 0.0
    %817 = vmatprep.subr.mxu0 0.0
    %818 = vmatpush1.msra.mxu0 0.0
    %819 = vmatprep.subr.mxu0 0.0
    %820 = vmatpush1.msra.mxu0 0.0
    %821 = vmatprep.subr.mxu0 0.0
    %822 = vmatpush1.msra.mxu0 0.0
    %823 = vmatprep.subr.mxu0 0.0
    %824 = vmatpush1.msra.mxu0 0.0
    %825 = vmatprep.subr.mxu0 0.0
    %826 = vmatpush1.msra.mxu0 0.0
    %827 = vmatprep.subr.mxu0 0.0
    %828 = vmatpush1.msra.mxu0 0.0
    %829 = vmatprep.subr.mxu0 0.0
    %830 = vmatpush1.msra.mxu0 0.0
    %831 = vmatprep.mubr.f32.mxu0 0.0
    %832 = vmatmul.mubr.f32.gmra.mrb[0].mxu0 %v765
    %v833 = vpop.f32.mrb[0].mxu0
    %v834 = vadd.f32 %v763, %v833
    %v835 = vpop.f32.mrb[0].mxu0
    %v836 = vadd.f32 %v763, %v835
    %837 = vdwg.mxu0
    %838 = vmatprep.subr.mxu0 %v740
    %839 = vmatpush1.msra.mxu0 %v739
    %840 = vmatprep.subr.mxu0 %v744
    %841 = vmatpush1.msra.mxu0 %v743
    %842 = vmatprep.subr.mxu0 %v748
    %843 = vmatpush1.msra.mxu0 %v747
    %844 = vmatprep.subr.mxu0 %v752
    %845 = vmatpush1.msra.mxu0 %v751
    %846 = vmatprep.subr.mxu0 0.0
    %847 = vmatpush1.msra.mxu0 0.0
    %848 = vmatprep.subr.mxu0 0.0
    %849 = vmatpush1.msra.mxu0 0.0
    %850 = vmatprep.subr.mxu0 0.0
    %851 = vmatpush1.msra.mxu0 0.0
    %852 = vmatprep.subr.mxu0 0.0
    %853 = vmatpush1.msra.mxu0 0.0
    %854 = vmatprep.subr.mxu0 0.0
    %855 = vmatpush1.msra.mxu0 0.0
    %856 = vmatprep.subr.mxu0 0.0
    %857 = vmatpush1.msra.mxu0 0.0
    %858 = vmatprep.subr.mxu0 0.0
    %859 = vmatpush1.msra.mxu0 0.0
    %860 = vmatprep.subr.mxu0 0.0
    %861 = vmatpush1.msra.mxu0 0.0
    %862 = vmatprep.subr.mxu0 0.0
    %863 = vmatpush1.msra.mxu0 0.0
    %864 = vmatprep.subr.mxu0 0.0
    %865 = vmatpush1.msra.mxu0 0.0
    %866 = vmatprep.subr.mxu0 0.0
    %867 = vmatpush1.msra.mxu0 0.0
    %868 = vmatprep.subr.mxu0 0.0
    %869 = vmatpush1.msra.mxu0 0.0
    %870 = vmatprep.subr.mxu0 0.0
    %871 = vmatpush1.msra.mxu0 0.0
    %872 = vmatprep.subr.mxu0 0.0
    %873 = vmatpush1.msra.mxu0 0.0
    %874 = vmatprep.subr.mxu0 0.0
    %875 = vmatpush1.msra.mxu0 0.0
    %876 = vmatprep.subr.mxu0 0.0
    %877 = vmatpush1.msra.mxu0 0.0
    %878 = vmatprep.subr.mxu0 0.0
    %879 = vmatpush1.msra.mxu0 0.0
    %880 = vmatprep.subr.mxu0 0.0
    %881 = vmatpush1.msra.mxu0 0.0
    %882 = vmatprep.subr.mxu0 0.0
    %883 = vmatpush1.msra.mxu0 0.0
    %884 = vmatprep.subr.mxu0 0.0
    %885 = vmatpush1.msra.mxu0 0.0
    %886 = vmatprep.subr.mxu0 0.0
    %887 = vmatpush1.msra.mxu0 0.0
    %888 = vmatprep.subr.mxu0 0.0
    %889 = vmatpush1.msra.mxu0 0.0
    %890 = vmatprep.subr.mxu0 0.0
    %891 = vmatpush1.msra.mxu0 0.0
    %892 = vmatprep.subr.mxu0 0.0
    %893 = vmatpush1.msra.mxu0 0.0
    %894 = vmatprep.subr.mxu0 0.0
    %895 = vmatpush1.msra.mxu0 0.0
    %896 = vmatprep.subr.mxu0 0.0
    %897 = vmatpush1.msra.mxu0 0.0
    %898 = vmatprep.subr.mxu0 0.0
    %899 = vmatpush1.msra.mxu0 0.0
    %900 = vmatprep.subr.mxu0 0.0
    %901 = vmatpush1.msra.mxu0 0.0
    %902 = vmatprep.mubr.f32.mxu0 0.0
    %903 = vmatmul.mubr.f32.gmra.mrb[0].mxu0 %v765
    %v904 = vpop.f32.mrb[0].mxu0
    %v905 = vadd.f32 %v763, %v904
    %v906 = vpop.f32.mrb[0].mxu0
    %v907 = vadd.f32 %v763, %v906
    %908 = vdwg.mxu0
    %v913 = vcombine.low %v834, %v836
    %v914 = vcombine.low %v905, %v907
    %v916 = vunpack.c.l.s4 1966171168
    %v917 = vunpack.c.0.s8 %v916
    %v918 = vlaneseq
    %v919 = vshrl.u32 %v918, 7
    %v920 = vsub.s32 %v917, %v919
    %v921 = vrot.slane %v913, %v920
    %v923 = vunpack.c.l.s4 1966171168
    %v924 = vunpack.c.0.s8 %v923
    %v925 = vlaneseq
    %v926 = vshrl.u32 %v925, 7
    %v927 = vsub.s32 %v924, %v926
    %v928 = vrot.slane %v914, %v927
    %v929 = vcombine.low %v921, %v928
    %v931 = vunpack.c.l.s4 1966171168
    %v932 = vunpack.c.0.s8 %v931
    %v933 = vlaneseq
    %v934 = vshrl.u32 %v933, 7
    %v935 = vsub.s32 %v932, %v934
    %v936 = vrot.slane %v929, %v935
    %v938 = vlaneseq
    %vm939 = vcmp.ge.s32.totalorder %v938, 0
    %vm940 = vcmp.lt.s32.totalorder %v938, 512
    %vm941 = vmand %vm939, %vm940
    %942 = vst.msk [vmem:[#allocation12] sm:$0xf] %vm941, %v936
    // Predicated region
    $region50: #{pinn_forward.1} parent=1 // pred_check
      _
    $region51: #{pinn_forward.1} parent=1 // pred_check_branch
      %944 = sbr.rel (0) target = $region53
    $region52: #{pinn_forward.1} parent=1 // pred_region
      %s946 = ssub.s32 64, 64
      %947 = vsyncadd [#allocation5], %s946
      %s949 = sshll.u32 [#allocation12], 4
      %s950 = int_to_ptr.vmem [resolvable:$true] %s949
      %952 = dma.vmem_to_hbm [thread:$0]  %s950, 64, %s7, [#allocation5]
    $region53: #{pinn_forward.1} parent=1 // pred_fallthru
      _
    // Predicated region
    $region54: #{pinn_forward.1} parent=1 // pred_check
      _
    $region55: #{pinn_forward.1} parent=1 // pred_check_branch
      %954 = sbr.rel (0) target = $region57
    $region56: #{pinn_forward.1} parent=1 // pred_region
      %955 = dma.done [#allocation5], 64
    $region57: #{pinn_forward.1} parent=1 // pred_fallthru
      _
    %956 = vsyncpa [#allocation4], 1
    %957 = vsyncpa [#allocation7], 1
    %958 = vsyncpa [#allocation10], 1
    %959 = vsyncpa [#allocation5], 1

</llo_original>
